<compile_context>
chip_gen: v5e
topology: v5e:2x2
jax: 0.10.0
libtpu: 0.0.40
codegen_flags: <defaults>
</compile_context>

<pallas_src>
import functools

import jax
import jax.numpy as jnp
from jax.experimental import pallas as pl
from jax.experimental.pallas import tpu as pltpu

_LANES = 128
_SUBLANES = 8


def _round_up(x: int, m: int) -> int:
    return (x + m - 1) // m * m


def _gather_only_kernel(idx_sref, emb_ref, logits_ref, *, tn, unroll):
    """Embedding row gather for one block of `tn` rows (targets=None path)."""
    base = pl.program_id(0) * tn

    def body(r, carry):
        token = idx_sref[base + r]
        logits_ref[pl.ds(r, 1), :] = emb_ref[pl.ds(token, 1), :]
        return carry

    jax.lax.fori_loop(0, tn, body, 0, unroll=unroll)


def _gather_loss_kernel(idx_sref, tgt_sref, emb_ref, logits_ref, loss_ref, *,
                        n_valid, v, tn, unroll):
    """Row gather + fused cross-entropy partial sum for one block of rows."""
    v_pad = logits_ref.shape[1]
    base = pl.program_id(0) * tn
    lane1 = jax.lax.broadcasted_iota(jnp.int32, (1, v_pad), 1)  # hoisted

    def body(r, tgt_logit_sum):
        g = base + r
        token = idx_sref[g]
        row = emb_ref[pl.ds(token, 1), :]                # (1, v_pad) f32
        logits_ref[pl.ds(r, 1), :] = row                 # lane-dense store
        # Target logit picked with a lane mask (VPU compare + XLU reduce);
        # target id is always < v so padded lanes never match.
        t_logit = jnp.sum(jnp.where(lane1 == tgt_sref[g], row, 0.0))
        return tgt_logit_sum + jnp.where(g < n_valid, t_logit, 0.0)

    tgt_logit_sum = jax.lax.fori_loop(0, tn, body, jnp.float32(0.0),
                                      unroll=unroll)

    # Block-wise log-sum-exp on the just-gathered rows; lane padding and row
    # padding are masked out.  Padded rows hold a valid (row 0) gather, so no
    # -inf/-inf NaN hazard.
    logits = logits_ref[...]                             # (tn, v_pad)
    lane = jax.lax.broadcasted_iota(jnp.int32, (tn, v_pad), 1)
    masked = jnp.where(lane < v, logits, -jnp.inf)
    m = jnp.max(masked, axis=-1, keepdims=True)          # (tn, 1)
    lse = m + jnp.log(jnp.sum(jnp.exp(masked - m), axis=-1, keepdims=True))
    row_id = base + jax.lax.broadcasted_iota(jnp.int32, (tn, 1), 0)
    lse_sum = jnp.sum(jnp.where(row_id < n_valid, lse, 0.0))

    part = lse_sum - tgt_logit_sum                       # this block's partial
    loss_ref[...] = jnp.broadcast_to(part, loss_ref.shape).astype(jnp.float32)


def bigram_forward(idx, emb_table, targets=None, *, block_rows=None):
    """Returns (logits, loss) exactly like BigramLanguageModel.forward."""
    B, T = idx.shape
    V = emb_table.shape[0]
    N = B * T

    v_pad = _round_up(V, _LANES)            # lane padding
    v_rows = _round_up(V, _SUBLANES)        # sublane padding of the table
    if block_rows is None:
        block_rows = 256
    tn = _round_up(min(block_rows, _round_up(N, _SUBLANES)), _SUBLANES)
    n_pad = _round_up(N, tn)
    num_blocks = n_pad // tn
    unroll = True if tn <= 32 else 8

    # Padded f32 table; token ids (and targets) as flat SMEM scalars.
    emb_pad = jnp.zeros((v_rows, v_pad), jnp.float32)
    emb_pad = emb_pad.at[:V, :V].set(emb_table.astype(jnp.float32))
    idx_flat = jnp.zeros((n_pad,), jnp.int32)
    idx_flat = idx_flat.at[:N].set(idx.reshape(N).astype(jnp.int32))

    compiler_params = pltpu.CompilerParams(
        dimension_semantics=("parallel",),
        vmem_limit_bytes=32 * 1024 * 1024,
    )
    emb_spec = pl.BlockSpec((v_rows, v_pad), lambda i, *_: (0, 0))   # resident
    logits_spec = pl.BlockSpec((tn, v_pad), lambda i, *_: (i, 0))    # per block

    if targets is None:
        kernel = functools.partial(_gather_only_kernel, tn=tn, unroll=unroll)
        logits_pad = pl.pallas_call(
            kernel,
            grid_spec=pltpu.PrefetchScalarGridSpec(
                num_scalar_prefetch=1,
                grid=(num_blocks,),
                in_specs=[emb_spec],
                out_specs=logits_spec,
            ),
            out_shape=jax.ShapeDtypeStruct((n_pad, v_pad), jnp.float32),
            compiler_params=compiler_params,
        )(idx_flat, emb_pad)
        # PyTorch keeps the (B, T, V) shape in this branch.
        return logits_pad[:N, :V].reshape(B, T, V), None

    tgt_flat = jnp.zeros((n_pad,), jnp.int32)
    tgt_flat = tgt_flat.at[:N].set(targets.reshape(N).astype(jnp.int32))

    kernel = functools.partial(_gather_loss_kernel, n_valid=N, v=V, tn=tn,
                               unroll=unroll)
    logits_pad, loss_parts = pl.pallas_call(
        kernel,
        grid_spec=pltpu.PrefetchScalarGridSpec(
            num_scalar_prefetch=2,
            grid=(num_blocks,),
            in_specs=[emb_spec],
            out_specs=(
                logits_spec,
                # (1, 1, 128) block: last two dims equal full array dims ->
                # satisfies the (8,128) rule and stores are lane-dense.
                pl.BlockSpec((1, 1, _LANES), lambda i, *_: (i, 0, 0)),
            ),
        ),
        out_shape=(
            jax.ShapeDtypeStruct((n_pad, v_pad), jnp.float32),
            jax.ShapeDtypeStruct((num_blocks, 1, _LANES), jnp.float32),
        ),
        compiler_params=compiler_params,
    )(idx_flat, tgt_flat, emb_pad)

    # Mean over the GLOBAL number of rows (matches F.cross_entropy default).
    loss = jnp.sum(loss_parts[:, 0, 0]) / jnp.float32(N)
    # PyTorch reassigns logits to the (B*T, V) view before returning.
    return logits_pad[:N, :V], loss


def _reference_forward(idx, emb_table, targets):
    B, T = idx.shape
    V = emb_table.shape[0]
    logits = emb_table[idx].reshape(B * T, V)
    tgt = targets.reshape(B * T)
    logp = jax.nn.log_softmax(logits, axis=-1)
    loss = -jnp.mean(logp[jnp.arange(B * T), tgt])
    return logits, loss


if __name__ == "__main__":
    vocab_size = 65          # tinyshakespeare-sized char vocab (not 8/128-aligned)
    B, T = 2, 8

    key = jax.random.PRNGKey(0)
    k_emb, k_idx, k_tgt = jax.random.split(key, 3)

    emb_table = jax.random.normal(k_emb, (vocab_size, vocab_size), jnp.float32)
    idx = jax.random.randint(k_idx, (B, T), 0, vocab_size, jnp.int32)
    targets = jax.random.randint(k_tgt, (B, T), 0, vocab_size, jnp.int32)

    # Training path (block_rows=8 -> multiple grid blocks exercised).
    logits, loss = bigram_forward(idx, emb_table, targets, block_rows=8)
    jax.block_until_ready((logits, loss))
    ref_logits, ref_loss = _reference_forward(idx, emb_table, targets)
    assert logits.shape == (B * T, vocab_size)
    assert jnp.allclose(logits, ref_logits, atol=1e-5, rtol=1e-5)
    assert jnp.allclose(loss, ref_loss, atol=1e-5, rtol=1e-5)

    # Ragged shape exercising padded rows in the last block.
    B2, T2 = 2, 5
    idx2 = jax.random.randint(k_idx, (B2, T2), 0, vocab_size, jnp.int32)
    tgt2 = jax.random.randint(k_tgt, (B2, T2), 0, vocab_size, jnp.int32)
    logits2, loss2 = bigram_forward(idx2, emb_table, tgt2, block_rows=8)
    jax.block_until_ready((logits2, loss2))
    ref_logits2, ref_loss2 = _reference_forward(idx2, emb_table, tgt2)
    assert jnp.allclose(logits2, ref_logits2, atol=1e-5, rtol=1e-5)
    assert jnp.allclose(loss2, ref_loss2, atol=1e-5, rtol=1e-5)

    # Single-block default tiling path (larger tn, one grid step).
    logits3, loss3 = bigram_forward(idx, emb_table, targets)
    jax.block_until_ready((logits3, loss3))
    assert jnp.allclose(logits3, ref_logits, atol=1e-5, rtol=1e-5)
    assert jnp.allclose(loss3, ref_loss, atol=1e-5, rtol=1e-5)

    # Inference path (targets=None): logits only, shape (B, T, V), no CE work.
    logits_no_tgt, loss_none = bigram_forward(idx, emb_table, None, block_rows=8)
    jax.block_until_ready(logits_no_tgt)
    assert logits_no_tgt.shape == (B, T, vocab_size)
    assert loss_none is None
    assert jnp.allclose(logits_no_tgt.reshape(B * T, vocab_size), ref_logits,
                        atol=1e-5, rtol=1e-5)

    print("KERNEL_OK")
</pallas_src>

<mosaic_0001>
module attributes {stable_mosaic.version = 11 : i64} {
  func.func @_gather_loss_kernel(%arg0: i32, %arg1: memref<16xi32, #tpu.memory_space<smem>>, %arg2: memref<16xi32, #tpu.memory_space<smem>>, %arg3: memref<72x128xf32, #tpu.memory_space<vmem>>, %arg4: memref<8x128xf32, #tpu.memory_space<vmem>>, %arg5: memref<1x1x128xf32, #tpu.memory_space<vmem>>) attributes {dimension_semantics = [#tpu.dimension_semantics<parallel>], iteration_bounds = array<i64: 2>, scalar_prefetch = 2 : i64, scratch_operands = 0 : i64, tpu.core_type = #tpu.core_type<tc>, window_params = [{pipeline_mode = #tpu.pipeline_mode<synchronous>, transform_indices = @transform_0, window_bounds = array<i64: 72, 128>}, {transform_indices = @transform_1, window_bounds = array<i64: 8, 128>}, {transform_indices = @transform_2, window_bounds = array<i64: 1, 1, 128>}]} {
    %c8_i32 = arith.constant 8 : i32
    %0 = arith.muli %arg0, %c8_i32 : i32
    %1 = tpu.iota {dimensions = array<i32: 1>} : vector<1x128xi32>
    %cst = arith.constant 0.000000e+00 : f32
    %c0_i32 = arith.constant 0 : i32
    %2 = arith.addi %0, %c0_i32 : i32
    %3 = arith.index_cast %2 : i32 to index
    %4 = memref.load %arg1[%3] : memref<16xi32, #tpu.memory_space<smem>>
    %5 = arith.index_cast %4 : i32 to index
    %c0 = arith.constant 0 : index
    %6 = vector.load %arg3[%5, %c0] : memref<72x128xf32, #tpu.memory_space<vmem>>, vector<1x128xf32>
    %7 = arith.index_cast %c0_i32 : i32 to index
    %c0_0 = arith.constant 0 : index
    %8 = vector.load %arg4[%7, %c0_0] : memref<8x128xf32, #tpu.memory_space<vmem>>, vector<1x128xf32>
    tpu.vector_store %arg4[%7, %c0_0], %6 {strides = array<i32>} : memref<8x128xf32, #tpu.memory_space<vmem>>, vector<1x128xf32>,
    %9 = arith.index_cast %2 : i32 to index
    %10 = memref.load %arg2[%9] : memref<16xi32, #tpu.memory_space<smem>>
    %11 = vector.broadcast %10 : i32 to vector<1x128xi32>
    %12 = arith.cmpi eq, %1, %11 : vector<1x128xi32>
    %cst_1 = arith.constant 0.000000e+00 : f32
    %13 = vector.broadcast %cst_1 : f32 to vector<1x128xf32>
    %14 = arith.select %12, %6, %13 : vector<1x128xi1>, vector<1x128xf32>
    %15 = vector.shape_cast %14 : vector<1x128xf32> to vector<1x1x128xf32>
    %cst_2 = arith.constant dense<0.000000e+00> : vector<1xf32>
    %16 = vector.multi_reduction <add>, %15, %cst_2 [1, 2] : vector<1x1x128xf32> to vector<1xf32>
    %17 = vector.shape_cast %16 : vector<1xf32> to vector<1x1x1xf32>
    %18 = vector.extract %17[0, 0, 0] : f32 from vector<1x1x1xf32>
    %c16_i32 = arith.constant 16 : i32
    %19 = arith.cmpi slt, %2, %c16_i32 : i32
    %cst_3 = arith.constant 0.000000e+00 : f32
    %20 = arith.select %19, %18, %cst_3 : f32
    %21 = arith.addf %cst, %20 : f32
    %c1_i32 = arith.constant 1 : i32
    %22 = arith.addi %0, %c1_i32 : i32
    %23 = arith.index_cast %22 : i32 to index
    %24 = memref.load %arg1[%23] : memref<16xi32, #tpu.memory_space<smem>>
    %25 = arith.index_cast %24 : i32 to index
    %c0_4 = arith.constant 0 : index
    %26 = vector.load %arg3[%25, %c0_4] : memref<72x128xf32, #tpu.memory_space<vmem>>, vector<1x128xf32>
    %27 = arith.index_cast %c1_i32 : i32 to index
    %c0_5 = arith.constant 0 : index
    %28 = vector.load %arg4[%27, %c0_5] : memref<8x128xf32, #tpu.memory_space<vmem>>, vector<1x128xf32>
    tpu.vector_store %arg4[%27, %c0_5], %26 {strides = array<i32>} : memref<8x128xf32, #tpu.memory_space<vmem>>, vector<1x128xf32>,
    %29 = arith.index_cast %22 : i32 to index
    %30 = memref.load %arg2[%29] : memref<16xi32, #tpu.memory_space<smem>>
    %31 = vector.broadcast %30 : i32 to vector<1x128xi32>
    %32 = arith.cmpi eq, %1, %31 : vector<1x128xi32>
    %cst_6 = arith.constant 0.000000e+00 : f32
    %33 = vector.broadcast %cst_6 : f32 to vector<1x128xf32>
    %34 = arith.select %32, %26, %33 : vector<1x128xi1>, vector<1x128xf32>
    %35 = vector.shape_cast %34 : vector<1x128xf32> to vector<1x1x128xf32>
    %cst_7 = arith.constant dense<0.000000e+00> : vector<1xf32>
    %36 = vector.multi_reduction <add>, %35, %cst_7 [1, 2] : vector<1x1x128xf32> to vector<1xf32>
    %37 = vector.shape_cast %36 : vector<1xf32> to vector<1x1x1xf32>
    %38 = vector.extract %37[0, 0, 0] : f32 from vector<1x1x1xf32>
    %c16_i32_8 = arith.constant 16 : i32
    %39 = arith.cmpi slt, %22, %c16_i32_8 : i32
    %cst_9 = arith.constant 0.000000e+00 : f32
    %40 = arith.select %39, %38, %cst_9 : f32
    %41 = arith.addf %21, %40 : f32
    %c2_i32 = arith.constant 2 : i32
    %42 = arith.addi %0, %c2_i32 : i32
    %43 = arith.index_cast %42 : i32 to index
    %44 = memref.load %arg1[%43] : memref<16xi32, #tpu.memory_space<smem>>
    %45 = arith.index_cast %44 : i32 to index
    %c0_10 = arith.constant 0 : index
    %46 = vector.load %arg3[%45, %c0_10] : memref<72x128xf32, #tpu.memory_space<vmem>>, vector<1x128xf32>
    %47 = arith.index_cast %c2_i32 : i32 to index
    %c0_11 = arith.constant 0 : index
    %48 = vector.load %arg4[%47, %c0_11] : memref<8x128xf32, #tpu.memory_space<vmem>>, vector<1x128xf32>
    tpu.vector_store %arg4[%47, %c0_11], %46 {strides = array<i32>} : memref<8x128xf32, #tpu.memory_space<vmem>>, vector<1x128xf32>,
    %49 = arith.index_cast %42 : i32 to index
    %50 = memref.load %arg2[%49] : memref<16xi32, #tpu.memory_space<smem>>
    %51 = vector.broadcast %50 : i32 to vector<1x128xi32>
    %52 = arith.cmpi eq, %1, %51 : vector<1x128xi32>
    %cst_12 = arith.constant 0.000000e+00 : f32
    %53 = vector.broadcast %cst_12 : f32 to vector<1x128xf32>
    %54 = arith.select %52, %46, %53 : vector<1x128xi1>, vector<1x128xf32>
    %55 = vector.shape_cast %54 : vector<1x128xf32> to vector<1x1x128xf32>
    %cst_13 = arith.constant dense<0.000000e+00> : vector<1xf32>
    %56 = vector.multi_reduction <add>, %55, %cst_13 [1, 2] : vector<1x1x128xf32> to vector<1xf32>
    %57 = vector.shape_cast %56 : vector<1xf32> to vector<1x1x1xf32>
    %58 = vector.extract %57[0, 0, 0] : f32 from vector<1x1x1xf32>
    %c16_i32_14 = arith.constant 16 : i32
    %59 = arith.cmpi slt, %42, %c16_i32_14 : i32
    %cst_15 = arith.constant 0.000000e+00 : f32
    %60 = arith.select %59, %58, %cst_15 : f32
    %61 = arith.addf %41, %60 : f32
    %c3_i32 = arith.constant 3 : i32
    %62 = arith.addi %0, %c3_i32 : i32
    %63 = arith.index_cast %62 : i32 to index
    %64 = memref.load %arg1[%63] : memref<16xi32, #tpu.memory_space<smem>>
    %65 = arith.index_cast %64 : i32 to index
    %c0_16 = arith.constant 0 : index
    %66 = vector.load %arg3[%65, %c0_16] : memref<72x128xf32, #tpu.memory_space<vmem>>, vector<1x128xf32>
    %67 = arith.index_cast %c3_i32 : i32 to index
    %c0_17 = arith.constant 0 : index
    %68 = vector.load %arg4[%67, %c0_17] : memref<8x128xf32, #tpu.memory_space<vmem>>, vector<1x128xf32>
    tpu.vector_store %arg4[%67, %c0_17], %66 {strides = array<i32>} : memref<8x128xf32, #tpu.memory_space<vmem>>, vector<1x128xf32>,
    %69 = arith.index_cast %62 : i32 to index
    %70 = memref.load %arg2[%69] : memref<16xi32, #tpu.memory_space<smem>>
    %71 = vector.broadcast %70 : i32 to vector<1x128xi32>
    %72 = arith.cmpi eq, %1, %71 : vector<1x128xi32>
    %cst_18 = arith.constant 0.000000e+00 : f32
    %73 = vector.broadcast %cst_18 : f32 to vector<1x128xf32>
    %74 = arith.select %72, %66, %73 : vector<1x128xi1>, vector<1x128xf32>
    %75 = vector.shape_cast %74 : vector<1x128xf32> to vector<1x1x128xf32>
    %cst_19 = arith.constant dense<0.000000e+00> : vector<1xf32>
    %76 = vector.multi_reduction <add>, %75, %cst_19 [1, 2] : vector<1x1x128xf32> to vector<1xf32>
    %77 = vector.shape_cast %76 : vector<1xf32> to vector<1x1x1xf32>
    %78 = vector.extract %77[0, 0, 0] : f32 from vector<1x1x1xf32>
    %c16_i32_20 = arith.constant 16 : i32
    %79 = arith.cmpi slt, %62, %c16_i32_20 : i32
    %cst_21 = arith.constant 0.000000e+00 : f32
    %80 = arith.select %79, %78, %cst_21 : f32
    %81 = arith.addf %61, %80 : f32
    %c4_i32 = arith.constant 4 : i32
    %82 = arith.addi %0, %c4_i32 : i32
    %83 = arith.index_cast %82 : i32 to index
    %84 = memref.load %arg1[%83] : memref<16xi32, #tpu.memory_space<smem>>
    %85 = arith.index_cast %84 : i32 to index
    %c0_22 = arith.constant 0 : index
    %86 = vector.load %arg3[%85, %c0_22] : memref<72x128xf32, #tpu.memory_space<vmem>>, vector<1x128xf32>
    %87 = arith.index_cast %c4_i32 : i32 to index
    %c0_23 = arith.constant 0 : index
    %88 = vector.load %arg4[%87, %c0_23] : memref<8x128xf32, #tpu.memory_space<vmem>>, vector<1x128xf32>
    tpu.vector_store %arg4[%87, %c0_23], %86 {strides = array<i32>} : memref<8x128xf32, #tpu.memory_space<vmem>>, vector<1x128xf32>,
    %89 = arith.index_cast %82 : i32 to index
    %90 = memref.load %arg2[%89] : memref<16xi32, #tpu.memory_space<smem>>
    %91 = vector.broadcast %90 : i32 to vector<1x128xi32>
    %92 = arith.cmpi eq, %1, %91 : vector<1x128xi32>
    %cst_24 = arith.constant 0.000000e+00 : f32
    %93 = vector.broadcast %cst_24 : f32 to vector<1x128xf32>
    %94 = arith.select %92, %86, %93 : vector<1x128xi1>, vector<1x128xf32>
    %95 = vector.shape_cast %94 : vector<1x128xf32> to vector<1x1x128xf32>
    %cst_25 = arith.constant dense<0.000000e+00> : vector<1xf32>
    %96 = vector.multi_reduction <add>, %95, %cst_25 [1, 2] : vector<1x1x128xf32> to vector<1xf32>
    %97 = vector.shape_cast %96 : vector<1xf32> to vector<1x1x1xf32>
    %98 = vector.extract %97[0, 0, 0] : f32 from vector<1x1x1xf32>
    %c16_i32_26 = arith.constant 16 : i32
    %99 = arith.cmpi slt, %82, %c16_i32_26 : i32
    %cst_27 = arith.constant 0.000000e+00 : f32
    %100 = arith.select %99, %98, %cst_27 : f32
    %101 = arith.addf %81, %100 : f32
    %c5_i32 = arith.constant 5 : i32
    %102 = arith.addi %0, %c5_i32 : i32
    %103 = arith.index_cast %102 : i32 to index
    %104 = memref.load %arg1[%103] : memref<16xi32, #tpu.memory_space<smem>>
    %105 = arith.index_cast %104 : i32 to index
    %c0_28 = arith.constant 0 : index
    %106 = vector.load %arg3[%105, %c0_28] : memref<72x128xf32, #tpu.memory_space<vmem>>, vector<1x128xf32>
    %107 = arith.index_cast %c5_i32 : i32 to index
    %c0_29 = arith.constant 0 : index
    %108 = vector.load %arg4[%107, %c0_29] : memref<8x128xf32, #tpu.memory_space<vmem>>, vector<1x128xf32>
    tpu.vector_store %arg4[%107, %c0_29], %106 {strides = array<i32>} : memref<8x128xf32, #tpu.memory_space<vmem>>, vector<1x128xf32>,
    %109 = arith.index_cast %102 : i32 to index
    %110 = memref.load %arg2[%109] : memref<16xi32, #tpu.memory_space<smem>>
    %111 = vector.broadcast %110 : i32 to vector<1x128xi32>
    %112 = arith.cmpi eq, %1, %111 : vector<1x128xi32>
    %cst_30 = arith.constant 0.000000e+00 : f32
    %113 = vector.broadcast %cst_30 : f32 to vector<1x128xf32>
    %114 = arith.select %112, %106, %113 : vector<1x128xi1>, vector<1x128xf32>
    %115 = vector.shape_cast %114 : vector<1x128xf32> to vector<1x1x128xf32>
    %cst_31 = arith.constant dense<0.000000e+00> : vector<1xf32>
    %116 = vector.multi_reduction <add>, %115, %cst_31 [1, 2] : vector<1x1x128xf32> to vector<1xf32>
    %117 = vector.shape_cast %116 : vector<1xf32> to vector<1x1x1xf32>
    %118 = vector.extract %117[0, 0, 0] : f32 from vector<1x1x1xf32>
    %c16_i32_32 = arith.constant 16 : i32
    %119 = arith.cmpi slt, %102, %c16_i32_32 : i32
    %cst_33 = arith.constant 0.000000e+00 : f32
    %120 = arith.select %119, %118, %cst_33 : f32
    %121 = arith.addf %101, %120 : f32
    %c6_i32 = arith.constant 6 : i32
    %122 = arith.addi %0, %c6_i32 : i32
    %123 = arith.index_cast %122 : i32 to index
    %124 = memref.load %arg1[%123] : memref<16xi32, #tpu.memory_space<smem>>
    %125 = arith.index_cast %124 : i32 to index
    %c0_34 = arith.constant 0 : index
    %126 = vector.load %arg3[%125, %c0_34] : memref<72x128xf32, #tpu.memory_space<vmem>>, vector<1x128xf32>
    %127 = arith.index_cast %c6_i32 : i32 to index
    %c0_35 = arith.constant 0 : index
    %128 = vector.load %arg4[%127, %c0_35] : memref<8x128xf32, #tpu.memory_space<vmem>>, vector<1x128xf32>
    tpu.vector_store %arg4[%127, %c0_35], %126 {strides = array<i32>} : memref<8x128xf32, #tpu.memory_space<vmem>>, vector<1x128xf32>,
    %129 = arith.index_cast %122 : i32 to index
    %130 = memref.load %arg2[%129] : memref<16xi32, #tpu.memory_space<smem>>
    %131 = vector.broadcast %130 : i32 to vector<1x128xi32>
    %132 = arith.cmpi eq, %1, %131 : vector<1x128xi32>
    %cst_36 = arith.constant 0.000000e+00 : f32
    %133 = vector.broadcast %cst_36 : f32 to vector<1x128xf32>
    %134 = arith.select %132, %126, %133 : vector<1x128xi1>, vector<1x128xf32>
    %135 = vector.shape_cast %134 : vector<1x128xf32> to vector<1x1x128xf32>
    %cst_37 = arith.constant dense<0.000000e+00> : vector<1xf32>
    %136 = vector.multi_reduction <add>, %135, %cst_37 [1, 2] : vector<1x1x128xf32> to vector<1xf32>
    %137 = vector.shape_cast %136 : vector<1xf32> to vector<1x1x1xf32>
    %138 = vector.extract %137[0, 0, 0] : f32 from vector<1x1x1xf32>
    %c16_i32_38 = arith.constant 16 : i32
    %139 = arith.cmpi slt, %122, %c16_i32_38 : i32
    %cst_39 = arith.constant 0.000000e+00 : f32
    %140 = arith.select %139, %138, %cst_39 : f32
    %141 = arith.addf %121, %140 : f32
    %c7_i32 = arith.constant 7 : i32
    %142 = arith.addi %0, %c7_i32 : i32
    %143 = arith.index_cast %142 : i32 to index
    %144 = memref.load %arg1[%143] : memref<16xi32, #tpu.memory_space<smem>>
    %145 = arith.index_cast %144 : i32 to index
    %c0_40 = arith.constant 0 : index
    %146 = vector.load %arg3[%145, %c0_40] : memref<72x128xf32, #tpu.memory_space<vmem>>, vector<1x128xf32>
    %147 = arith.index_cast %c7_i32 : i32 to index
    %c0_41 = arith.constant 0 : index
    %148 = vector.load %arg4[%147, %c0_41] : memref<8x128xf32, #tpu.memory_space<vmem>>, vector<1x128xf32>
    tpu.vector_store %arg4[%147, %c0_41], %146 {strides = array<i32>} : memref<8x128xf32, #tpu.memory_space<vmem>>, vector<1x128xf32>,
    %149 = arith.index_cast %142 : i32 to index
    %150 = memref.load %arg2[%149] : memref<16xi32, #tpu.memory_space<smem>>
    %151 = vector.broadcast %150 : i32 to vector<1x128xi32>
    %152 = arith.cmpi eq, %1, %151 : vector<1x128xi32>
    %cst_42 = arith.constant 0.000000e+00 : f32
    %153 = vector.broadcast %cst_42 : f32 to vector<1x128xf32>
    %154 = arith.select %152, %146, %153 : vector<1x128xi1>, vector<1x128xf32>
    %155 = vector.shape_cast %154 : vector<1x128xf32> to vector<1x1x128xf32>
    %cst_43 = arith.constant dense<0.000000e+00> : vector<1xf32>
    %156 = vector.multi_reduction <add>, %155, %cst_43 [1, 2] : vector<1x1x128xf32> to vector<1xf32>
    %157 = vector.shape_cast %156 : vector<1xf32> to vector<1x1x1xf32>
    %158 = vector.extract %157[0, 0, 0] : f32 from vector<1x1x1xf32>
    %c16_i32_44 = arith.constant 16 : i32
    %159 = arith.cmpi slt, %142, %c16_i32_44 : i32
    %cst_45 = arith.constant 0.000000e+00 : f32
    %160 = arith.select %159, %158, %cst_45 : f32
    %161 = arith.addf %141, %160 : f32
    %c8_i32_46 = arith.constant 8 : i32
    %c0_47 = arith.constant 0 : index
    %c0_48 = arith.constant 0 : index
    %162 = vector.load %arg4[%c0_47, %c0_48] : memref<8x128xf32, #tpu.memory_space<vmem>>, vector<8x128xf32>
    %163 = tpu.iota {dimensions = array<i32: 1>} : vector<8x128xi32>
    %c65_i32 = arith.constant 65 : i32
    %164 = vector.broadcast %c65_i32 : i32 to vector<8x128xi32>
    %165 = arith.cmpi slt, %163, %164 : vector<8x128xi32>
    %cst_49 = arith.constant 0xFF800000 : f32
    %166 = vector.broadcast %cst_49 : f32 to vector<8x128xf32>
    %167 = arith.select %165, %162, %166 : vector<8x128xi1>, vector<8x128xf32>
    %cst_50 = arith.constant dense<0xFF800000> : vector<8xf32>
    %168 = vector.multi_reduction <maximumf>, %167, %cst_50 [1] : vector<8x128xf32> to vector<8xf32>
    %169 = vector.shape_cast %168 : vector<8xf32> to vector<8x1xf32>
    %170 = vector.broadcast %169 : vector<8x1xf32> to vector<8x128xf32>
    %171 = arith.subf %167, %170 : vector<8x128xf32>
    %172 = math.exp %171 : vector<8x128xf32>
    %cst_51 = arith.constant dense<0.000000e+00> : vector<8xf32>
    %173 = vector.multi_reduction <add>, %172, %cst_51 [1] : vector<8x128xf32> to vector<8xf32>
    %174 = vector.shape_cast %173 : vector<8xf32> to vector<8x1xf32>
    %175 = math.log %174 : vector<8x1xf32>
    %176 = arith.addf %169, %175 : vector<8x1xf32>
    %177 = tpu.iota {dimensions = array<i32: 0>} : vector<8x1xi32>
    %178 = vector.broadcast %0 : i32 to vector<8x1xi32>
    %179 = arith.addi %178, %177 : vector<8x1xi32>
    %c16_i32_52 = arith.constant 16 : i32
    %180 = vector.broadcast %c16_i32_52 : i32 to vector<8x1xi32>
    %181 = arith.cmpi slt, %179, %180 : vector<8x1xi32>
    %cst_53 = arith.constant 0.000000e+00 : f32
    %182 = vector.broadcast %cst_53 : f32 to vector<8x1xf32>
    %183 = arith.select %181, %176, %182 : vector<8x1xi1>, vector<8x1xf32>
    %184 = vector.shape_cast %183 : vector<8x1xf32> to vector<1x8x1xf32>
    %cst_54 = arith.constant dense<0.000000e+00> : vector<1xf32>
    %185 = vector.multi_reduction <add>, %184, %cst_54 [1, 2] : vector<1x8x1xf32> to vector<1xf32>
    %186 = vector.shape_cast %185 : vector<1xf32> to vector<1x1x1xf32>
    %187 = vector.extract %186[0, 0, 0] : f32 from vector<1x1x1xf32>
    %188 = arith.subf %187, %161 : f32
    %189 = vector.broadcast %188 : f32 to vector<1x1x128xf32>
    %c0_55 = arith.constant 0 : index
    %c0_56 = arith.constant 0 : index
    %c0_57 = arith.constant 0 : index
    %190 = vector.load %arg5[%c0_55, %c0_56, %c0_57] : memref<1x1x128xf32, #tpu.memory_space<vmem>>, vector<1x1x128xf32>
    tpu.vector_store %arg5[%c0_55, %c0_56, %c0_57], %189 {strides = array<i32>} : memref<1x1x128xf32, #tpu.memory_space<vmem>>, vector<1x1x128xf32>,
    return
  }
  func.func @transform_0(%arg0: i32, %arg1: memref<16xi32, #tpu.memory_space<smem>>, %arg2: memref<16xi32, #tpu.memory_space<smem>>) -> (i32, i32) {
    %c0_i32 = arith.constant 0 : i32
    %c0_i32_0 = arith.constant 0 : i32
    %c0_i32_1 = arith.constant 0 : i32
    return %c0_i32, %c0_i32_0 : i32, i32
  }
  func.func @transform_1(%arg0: i32, %arg1: memref<16xi32, #tpu.memory_space<smem>>, %arg2: memref<16xi32, #tpu.memory_space<smem>>) -> (i32, i32) {
    %c0_i32 = arith.constant 0 : i32
    %c0_i32_0 = arith.constant 0 : i32
    return %arg0, %c0_i32 : i32, i32
  }
  func.func @transform_2(%arg0: i32, %arg1: memref<16xi32, #tpu.memory_space<smem>>, %arg2: memref<16xi32, #tpu.memory_space<smem>>) -> (i32, i32, i32) {
    %c0_i32 = arith.constant 0 : i32
    %c0_i32_0 = arith.constant 0 : i32
    %c0_i32_1 = arith.constant 0 : i32
    return %arg0, %c0_i32, %c0_i32_0 : i32, i32, i32
  }
}

</mosaic_0001>

<llo_original>
// kernel: tpu_custom_call.1
$region0: #{tpu_custom_call.1}
  #allocation0 [shape = 'u32[]', space=smem, size = 0x4, offset = 0x4, fixed_abs, tag = 'smem constant byte address 0x4 - core index']
  #allocation1 [shape = 'u32[72,128]{1,0:T(1,128)}', space=vmem, size = 0x9000, scoped, tag = 'internal scratch']
  #allocation2 [shape = 's32[1]{0}', space=sflag, size = 0x4, scoped, tag = 'scoped memory for tpu_custom_call.1']
  #allocation3 [shape = 'u8[512]{0}', space=smem, size = 0x200, scoped, tag = 'prefetched SMEM operand 0']
  #allocation4 [shape = 'u8[512]{0}', space=smem, size = 0x200, scoped, tag = 'prefetched SMEM operand 1']
  %s0 = inlined_call_operand.hbm [shape: s32[16], index: 0, kind: input, shape index: {}]
  %s1 = inlined_call_operand.hbm [shape: s32[16], index: 1, kind: input, shape index: {}]
  %s2 = inlined_call_operand.hbm [shape: f32[72,128], index: 2, kind: input, shape index: {}]
  %s3 = inlined_call_operand.hbm [shape: f32[16,128], index: 3, kind: output, shape index: {0}]
  %s4 = inlined_call_operand.hbm [shape: f32[2,1,128], index: 4, kind: output, shape index: {1}]
  %5 = xla_tuple %s3, %s4
  %s6 = sld [smem:[#allocation0]]
  $region49: #{tpu_custom_call.1} parent=0
    _
  %s8 = ssub.s32 1, %s6
  %s9 = scalar_select 0, %s8, %s6
  %s11 = sshll.u32 %s0, 4
  %s12 = int_to_ptr.hbm [resolvable:$true] %s11
  %14 = dma.hbm_to_smem %s12, 16, [#allocation3], [#allocation2]
  %s16 = sshll.u32 %s1, 4
  %s17 = int_to_ptr.hbm [resolvable:$true] %s16
  %19 = dma.hbm_to_smem %s17, 16, [#allocation4], [#allocation2]
  %21 = dma.done [#allocation2], 32
  %22 = sfence
  $region1: #{tpu_custom_call.1} parent=0
    #allocation5 [shape = 'u8[36864]{0}', space=vmem, size = 0x9000, scoped, tag = 'input window, operand 2, single buffered']
    #allocation6 [shape = 's32[2]{0}', space=sflag, size = 0x8, scoped, tag = 'scoped memory for tpu_custom_call.1']
    #allocation7 [shape = 's32[2]{0}', space=sflag, size = 0x8, scoped, tag = 'scoped memory for tpu_custom_call.1']
    #allocation8 [shape = 'u8[8192]{0}', space=vmem, size = 0x2000, scoped, tag = 'output window, operand 0']
    #allocation9 [shape = 'u8[1024]{0}', space=vmem, size = 0x400, scoped, tag = 'output window, operand 1']
    #allocation10 [shape = 's32[2]{0}', space=sflag, size = 0x8, scoped, tag = 'scoped memory for tpu_custom_call.1']
    %23 = vsyncpa [#allocation6], 0
    %24 = vsyncpa [#allocation7], 0
    %s25 = scalar_lea.sflag [#allocation7], 1
    %26 = vsyncpa %s25, 0
    %27 = vsyncpa [#allocation10], 0
    %s28 = scalar_lea.sflag [#allocation10], 1
    %29 = vsyncpa %s28, 0
    loop: start=0, step=1, limit=4
    $region2: #{tpu_custom_call.1} parent=1 // loop_pre_header
      _
    $region3: #{tpu_custom_call.1} parent=1 // loop_header
      %s31 = sphi 0, %s35
      %p32 = scmp.ge.s32.totalorder %s31, 4
      %s39 = sphi 0, %s39
      %s41 = sphi 0, %s39
      %s42 = sphi 0, %s41
      %s56 = sphi 0, %s42
      %s62 = sphi 0, %s64
      %s65 = sphi 0, %s62
      %s66 = sphi 0, %s65
      %s82 = sphi 0, %s66
      %s88 = sphi 0, %s90
      %s91 = sphi 0, %s88
      %s92 = sphi 0, %s91
      %s108 = sphi 0, %s92
    $region4: #{tpu_custom_call.1} parent=1 // loop_header_branch
      %34 = sbr.rel (%p32) target = $region8
    $region5: #{tpu_custom_call.1} parent=1 // loop_body
      %s36 = ssub.s32 %s31, 1
      %s37 = ssub.s32 %s31, 2
      %s38 = sadd.s32 %s31, 1
      %s40 = sadd.s32 %s39, 1
      %p43 = scmp.eq.s32.totalorder %s31, 1
      %p44 = scmp.ne.s32.totalorder %s39, %s41
      %p45 = scmp.eq.s32.totalorder %s31, 0
      %p46 = por %p44, %p45
      %p47 = scmp.ne.s32.totalorder %s39, %s41
      %p48 = scmp.eq.s32.totalorder %s36, 1
      %p49 = por %p47, %p48
      %p50 = scmp.ne.s32.totalorder %s41, %s42
      %p51 = scmp.eq.s32.totalorder %s36, 0
      %p52 = por %p50, %p51
      %p53 = scmp.ne.s32.totalorder %s41, %s42
      %p54 = scmp.eq.s32.totalorder %s37, 1
      %p55 = por %p53, %p54
      %p57 = scmp.ne.s32.totalorder %s42, %s56
      %p58 = scmp.eq.s32.totalorder %s37, 0
      %p59 = por %p57, %p58
      %s60 = ssub.s32 %s31, %s38
      %p61 = scmp.eq.s32.totalorder %s60, 0
      %s63 = sadd.s32 %s62, 1
      %s64 = scalar_select %p61, %s62, %s63
      %p67 = pneg %p61
      %p68 = scmp.eq.s32.totalorder %s31, 1
      %p69 = por %p67, %p68
      %p70 = scmp.ne.s32.totalorder %s62, %s65
      %p71 = scmp.eq.s32.totalorder %s31, 0
      %p72 = por %p70, %p71
      %p73 = scmp.ne.s32.totalorder %s62, %s65
      %p74 = scmp.eq.s32.totalorder %s36, 1
      %p75 = por %p73, %p74
      %p76 = scmp.ne.s32.totalorder %s65, %s66
      %p77 = scmp.eq.s32.totalorder %s36, 0
      %p78 = por %p76, %p77
      %p79 = scmp.ne.s32.totalorder %s65, %s66
      %p80 = scmp.eq.s32.totalorder %s37, 1
      %p81 = por %p79, %p80
      %p83 = scmp.ne.s32.totalorder %s66, %s82
      %p84 = scmp.eq.s32.totalorder %s37, 0
      %p85 = por %p83, %p84
      %s86 = ssub.s32 %s31, %s38
      %p87 = scmp.eq.s32.totalorder %s86, 0
      %s89 = sadd.s32 %s88, 1
      %s90 = scalar_select %p87, %s88, %s89
      %p93 = pneg %p87
      %p94 = scmp.eq.s32.totalorder %s31, 1
      %p95 = por %p93, %p94
      %p96 = scmp.ne.s32.totalorder %s88, %s91
      %p97 = scmp.eq.s32.totalorder %s31, 0
      %p98 = por %p96, %p97
      %p99 = scmp.ne.s32.totalorder %s88, %s91
      %p100 = scmp.eq.s32.totalorder %s36, 1
      %p101 = por %p99, %p100
      %p102 = scmp.ne.s32.totalorder %s91, %s92
      %p103 = scmp.eq.s32.totalorder %s36, 0
      %p104 = por %p102, %p103
      %p105 = scmp.ne.s32.totalorder %s91, %s92
      %p106 = scmp.eq.s32.totalorder %s37, 1
      %p107 = por %p105, %p106
      %p109 = scmp.ne.s32.totalorder %s92, %s108
      %p110 = scmp.eq.s32.totalorder %s37, 0
      %p111 = por %p109, %p110
      %p112 = scmp.le.s32.totalorder 1, %s31
      %p113 = scmp.lt.s32.totalorder %s31, 3
      %p114 = pnand %p112, %p113
      %p115 = pneg %p114
      // Predicated region
      $region9: #{tpu_custom_call.1} parent=5 // pred_check
        _
      $region10: #{tpu_custom_call.1} parent=5 // pred_check_branch
        %117 = sbr.rel (%p114) target = $region12
      $region11: #{tpu_custom_call.1} parent=5 // pred_region
        %s118 = ssub.s32 %s31, 1
        // Predicated region
        $region13: #{tpu_custom_call.1} parent=11 // pred_check
          %p119 = pneg %p52
        $region14: #{tpu_custom_call.1} parent=11 // pred_check_branch
          %121 = sbr.rel (%p119) target = $region16
        $region15: #{tpu_custom_call.1} parent=11 // pred_region
          %123 = vsyncadd [#allocation6], 0
          %s124 = sshll.u32 %s2, 4
          %s125 = int_to_ptr.hbm [resolvable:$true] %s124
          %s126 = sshll.u32 [#allocation5], 4
          %s127 = int_to_ptr.vmem [resolvable:$true] %s126
          %132 = dma.hbm_to_vmem [thread:$0]  %s125, 1152, %s127, [#allocation6], 128, 128, 8
        $region16: #{tpu_custom_call.1} parent=11 // pred_fallthru
          _
      $region12: #{tpu_custom_call.1} parent=5 // pred_fallthru
        _
      %p133 = scmp.lt.s32.totalorder %s31, 2
      // Predicated region
      $region17: #{tpu_custom_call.1} parent=5 // pred_check
        %p134 = pneg %p133
      $region18: #{tpu_custom_call.1} parent=5 // pred_check_branch
        %136 = sbr.rel (%p134) target = $region20
      $region19: #{tpu_custom_call.1} parent=5 // pred_region
        _
      $region20: #{tpu_custom_call.1} parent=5 // pred_fallthru
        _
      %p137 = scmp.le.s32.totalorder 1, %s31
      %p138 = scmp.lt.s32.totalorder %s31, 3
      %p139 = pnand %p137, %p138
      %p140 = pneg %p139
      // Predicated region
      $region21: #{tpu_custom_call.1} parent=5 // pred_check
        _
      $region22: #{tpu_custom_call.1} parent=5 // pred_check_branch
        %142 = sbr.rel (%p139) target = $region24
      $region23: #{tpu_custom_call.1} parent=5 // pred_region
        %s143 = ssub.s32 %s31, 1
        // Predicated region
        $region25: #{tpu_custom_call.1} parent=23 // pred_check
          %p144 = pneg %p52
        $region26: #{tpu_custom_call.1} parent=23 // pred_check_branch
          %146 = sbr.rel (%p144) target = $region28
        $region27: #{tpu_custom_call.1} parent=23 // pred_region
          %148 = dma.done [#allocation6], 1152
        $region28: #{tpu_custom_call.1} parent=23 // pred_fallthru
          _
        %p149 = pneg %p52
        %p150 = pneg %p49
        %p151 = pneg %p78
        %p152 = pneg %p75
        %s153 = sand.u32 %s65, 1
        %s154 = scalar_lea.sflag [#allocation7], %s153
        %s155 = sand.u32 %s65, 1
        %s156 = smul.addr %s155, 8
        %s157 = scalar_lea.vmem [#allocation8], %s156
        %p158 = pneg %p104
        %p159 = pneg %p101
        %s160 = sand.u32 %s91, 1
        %s161 = scalar_lea.sflag [#allocation10], %s160
        %s162 = sand.u32 %s91, 1
        %s163 = scalar_lea.vmem [#allocation9], %s162
        %s164 = smul.u32 %s36, 8
        %v165 = vlaneseq
        %v166 = vand.u32 %v165, 127
        %s167 = sld [smem:[#allocation3 + %s164]]
        %s168 = scalar_lea.vmem [#allocation5], %s167
        %v169 = vld [vmem:[%s168] sm:$0x1]
        %170 = vst [vmem:[%s157] sm:$0x1] %v169
        %s171 = sld [smem:[#allocation4 + %s164]]
        %v172 = vstv %s171
        %vm173 = vcmp.eq.s32.totalorder %v166, %v172
        %v174 = vsel %vm173, %v169, 0.0
        %vm175 = vcmask 1040384
        %v176 = vsel %vm175, %v174, 0.0
        %177 = vadd.xlane.f32.xlu0 %v176
        %v178 = vpop.xlane.xlu0 %177
        %v179 = vrot.slane %v178, 4
        %v180 = vadd.f32 %v178, %v179
        %v181 = vrot.slane %v180, 2
        %v182 = vadd.f32 %v180, %v181
        %v183 = vrot.slane %v182, 1
        %v184 = vadd.f32 %v182, %v183
        %s185 = vtos %v184
        %p186 = scmp.lt.s32.totalorder %s164, 16
        %s187 = scalar_select %p186, %s185, 0.0
        %s188 = sadd.f32 %s187, 0.0
        %s189 = sadd.s32 %s164, 1
        %s190 = sld [smem:[#allocation3 + %s189]]
        %s191 = scalar_lea.vmem [#allocation5], %s190
        %v192 = vld [vmem:[%s191] sm:$0x1]
        %193 = vst [vmem:[%s157 + $0x1] sm:$0x1] %v192
        %s194 = sld [smem:[#allocation4 + %s189]]
        %v195 = vstv %s194
        %vm196 = vcmp.eq.s32.totalorder %v166, %v195
        %v197 = vsel %vm196, %v192, 0.0
        %v198 = vsel %vm175, %v197, 0.0
        %199 = vadd.xlane.f32.xlu0 %v198
        %v200 = vpop.xlane.xlu0 %199
        %v201 = vrot.slane %v200, 4
        %v202 = vadd.f32 %v200, %v201
        %v203 = vrot.slane %v202, 2
        %v204 = vadd.f32 %v202, %v203
        %v205 = vrot.slane %v204, 1
        %v206 = vadd.f32 %v204, %v205
        %s207 = vtos %v206
        %p208 = scmp.lt.s32.totalorder %s189, 16
        %s209 = scalar_select %p208, %s207, 0.0
        %s210 = sadd.f32 %s188, %s209
        %s211 = sadd.s32 %s164, 2
        %s212 = sld [smem:[#allocation3 + %s211]]
        %s213 = scalar_lea.vmem [#allocation5], %s212
        %v214 = vld [vmem:[%s213] sm:$0x1]
        %215 = vst [vmem:[%s157 + $0x2] sm:$0x1] %v214
        %s216 = sld [smem:[#allocation4 + %s211]]
        %v217 = vstv %s216
        %vm218 = vcmp.eq.s32.totalorder %v166, %v217
        %v219 = vsel %vm218, %v214, 0.0
        %v220 = vsel %vm175, %v219, 0.0
        %221 = vadd.xlane.f32.xlu0 %v220
        %v222 = vpop.xlane.xlu0 %221
        %v223 = vrot.slane %v222, 4
        %v224 = vadd.f32 %v222, %v223
        %v225 = vrot.slane %v224, 2
        %v226 = vadd.f32 %v224, %v225
        %v227 = vrot.slane %v226, 1
        %v228 = vadd.f32 %v226, %v227
        %s229 = vtos %v228
        %p230 = scmp.lt.s32.totalorder %s211, 16
        %s231 = scalar_select %p230, %s229, 0.0
        %s232 = sadd.f32 %s210, %s231
        %s233 = sadd.s32 %s164, 3
        %s234 = sld [smem:[#allocation3 + %s233]]
        %s235 = scalar_lea.vmem [#allocation5], %s234
        %v236 = vld [vmem:[%s235] sm:$0x1]
        %237 = vst [vmem:[%s157 + $0x3] sm:$0x1] %v236
        %s238 = sld [smem:[#allocation4 + %s233]]
        %v239 = vstv %s238
        %vm240 = vcmp.eq.s32.totalorder %v166, %v239
        %v241 = vsel %vm240, %v236, 0.0
        %v242 = vsel %vm175, %v241, 0.0
        %243 = vadd.xlane.f32.xlu0 %v242
        %v244 = vpop.xlane.xlu0 %243
        %v245 = vrot.slane %v244, 4
        %v246 = vadd.f32 %v244, %v245
        %v247 = vrot.slane %v246, 2
        %v248 = vadd.f32 %v246, %v247
        %v249 = vrot.slane %v248, 1
        %v250 = vadd.f32 %v248, %v249
        %s251 = vtos %v250
        %p252 = scmp.lt.s32.totalorder %s233, 16
        %s253 = scalar_select %p252, %s251, 0.0
        %s254 = sadd.f32 %s232, %s253
        %s255 = sadd.s32 %s164, 4
        %s256 = sld [smem:[#allocation3 + %s255]]
        %s257 = scalar_lea.vmem [#allocation5], %s256
        %v258 = vld [vmem:[%s257] sm:$0x1]
        %259 = vst [vmem:[%s157 + $0x4] sm:$0x1] %v258
        %s260 = sld [smem:[#allocation4 + %s255]]
        %v261 = vstv %s260
        %vm262 = vcmp.eq.s32.totalorder %v166, %v261
        %v263 = vsel %vm262, %v258, 0.0
        %v264 = vsel %vm175, %v263, 0.0
        %265 = vadd.xlane.f32.xlu0 %v264
        %v266 = vpop.xlane.xlu0 %265
        %v267 = vrot.slane %v266, 4
        %v268 = vadd.f32 %v266, %v267
        %v269 = vrot.slane %v268, 2
        %v270 = vadd.f32 %v268, %v269
        %v271 = vrot.slane %v270, 1
        %v272 = vadd.f32 %v270, %v271
        %s273 = vtos %v272
        %p274 = scmp.lt.s32.totalorder %s255, 16
        %s275 = scalar_select %p274, %s273, 0.0
        %s276 = sadd.f32 %s254, %s275
        %s277 = sadd.s32 %s164, 5
        %s278 = sld [smem:[#allocation3 + %s277]]
        %s279 = scalar_lea.vmem [#allocation5], %s278
        %v280 = vld [vmem:[%s279] sm:$0x1]
        %281 = vst [vmem:[%s157 + $0x5] sm:$0x1] %v280
        %s282 = sld [smem:[#allocation4 + %s277]]
        %v283 = vstv %s282
        %vm284 = vcmp.eq.s32.totalorder %v166, %v283
        %v285 = vsel %vm284, %v280, 0.0
        %v286 = vsel %vm175, %v285, 0.0
        %287 = vadd.xlane.f32.xlu0 %v286
        %v288 = vpop.xlane.xlu0 %287
        %v289 = vrot.slane %v288, 4
        %v290 = vadd.f32 %v288, %v289
        %v291 = vrot.slane %v290, 2
        %v292 = vadd.f32 %v290, %v291
        %v293 = vrot.slane %v292, 1
        %v294 = vadd.f32 %v292, %v293
        %s295 = vtos %v294
        %p296 = scmp.lt.s32.totalorder %s277, 16
        %s297 = scalar_select %p296, %s295, 0.0
        %s298 = sadd.f32 %s276, %s297
        %s299 = sadd.s32 %s164, 6
        %s300 = sld [smem:[#allocation3 + %s299]]
        %s301 = scalar_lea.vmem [#allocation5], %s300
        %v302 = vld [vmem:[%s301] sm:$0x1]
        %303 = vst [vmem:[%s157 + $0x6] sm:$0x1] %v302
        %s304 = sld [smem:[#allocation4 + %s299]]
        %v305 = vstv %s304
        %vm306 = vcmp.eq.s32.totalorder %v166, %v305
        %v307 = vsel %vm306, %v302, 0.0
        %v308 = vsel %vm175, %v307, 0.0
        %309 = vadd.xlane.f32.xlu0 %v308
        %v310 = vpop.xlane.xlu0 %309
        %v311 = vrot.slane %v310, 4
        %v312 = vadd.f32 %v310, %v311
        %v313 = vrot.slane %v312, 2
        %v314 = vadd.f32 %v312, %v313
        %v315 = vrot.slane %v314, 1
        %v316 = vadd.f32 %v314, %v315
        %s317 = vtos %v316
        %p318 = scmp.lt.s32.totalorder %s299, 16
        %s319 = scalar_select %p318, %s317, 0.0
        %s320 = sadd.f32 %s298, %s319
        %s321 = sadd.s32 %s164, 7
        %s322 = sld [smem:[#allocation3 + %s321]]
        %s323 = scalar_lea.vmem [#allocation5], %s322
        %v324 = vld [vmem:[%s323] sm:$0x1]
        %325 = vst [vmem:[%s157 + $0x7] sm:$0x1] %v324
        %s326 = sld [smem:[#allocation4 + %s321]]
        %v327 = vstv %s326
        %vm328 = vcmp.eq.s32.totalorder %v166, %v327
        %v329 = vsel %vm328, %v324, 0.0
        %v330 = vsel %vm175, %v329, 0.0
        %331 = vadd.xlane.f32.xlu0 %v330
        %v332 = vpop.xlane.xlu0 %331
        %v333 = vrot.slane %v332, 4
        %v334 = vadd.f32 %v332, %v333
        %v335 = vrot.slane %v334, 2
        %v336 = vadd.f32 %v334, %v335
        %v337 = vrot.slane %v336, 1
        %v338 = vadd.f32 %v336, %v337
        %s339 = vtos %v338
        %p340 = scmp.lt.s32.totalorder %s321, 16
        %s341 = scalar_select %p340, %s339, 0.0
        %s342 = sadd.f32 %s320, %s341
        %v343 = vld [vmem:[%s157] sm:$0xff]
        %vm344 = vcmp.lt.s32.totalorder %v166, 65
        %v345 = vsel %vm344, %v343, -inf
        %346 = vmax.xlane.f32.xlu0 %v345
        %v347 = vpop.xlane.xlu0 %346
        %v348 = vsub.f32 %v345, %v347
        %v349 = vmul.f32 %v348, 1.442695
        %v350 = vpow.pop %v349
        %351 = vadd.xlane.f32.xlu0 %v350
        %v352 = vpop.xlane.xlu0 %351
        %v353 = vlog2.pop %v352
        %v354 = vmul.f32 %v353, 0.6931472
        %v355 = vadd.f32 %v347, %v354
        %v356 = vlaneseq
        %v357 = vshrl.u32 %v356, 7
        %v358 = vstv %s164
        %v359 = vadd.s32 %v358, %v357
        %vm360 = vcmp.lt.s32.totalorder %v359, 16
        %v361 = vsel %vm360, %v355, 0.0
        %vm362 = vcmask 7168
        %v363 = vsel %vm362, %v361, 0.0
        %364 = vadd.xlane.f32.xlu0 %v363
        %v365 = vpop.xlane.xlu0 %364
        %v366 = vrot.slane %v365, 4
        %v367 = vadd.f32 %v365, %v366
        %v368 = vrot.slane %v367, 2
        %v369 = vadd.f32 %v367, %v368
        %v370 = vrot.slane %v369, 1
        %v371 = vadd.f32 %v369, %v370
        %s372 = vtos %v371
        %s373 = ssub.f32 %s372, %s342
        %v374 = vstv %s373
        %375 = vst [vmem:[%s163] sm:$0x1] %v374
        %s376 = sand.u32 %s65, 1
        %s377 = scalar_lea.sflag [#allocation7], %s376
        %s378 = sand.u32 %s65, 1
        %s379 = smul.addr %s378, 8
        %s380 = scalar_lea.vmem [#allocation8], %s379
        %s381 = sand.u32 %s91, 1
        %s382 = scalar_lea.sflag [#allocation10], %s381
        %s383 = sand.u32 %s91, 1
        %s384 = scalar_lea.vmem [#allocation9], %s383
        // Predicated region
        $region29: #{tpu_custom_call.1} parent=23 // pred_check
          %p385 = pneg %p75
        $region30: #{tpu_custom_call.1} parent=23 // pred_check_branch
          %387 = sbr.rel (%p385) target = $region32
        $region31: #{tpu_custom_call.1} parent=23 // pred_region
          %389 = vsyncadd %s377, 0
          %s390 = smul.addr %s36, 8
          %s391 = scalar_lea.hbm %s3, %s390
          %s393 = sshll.u32 %s380, 4
          %s394 = int_to_ptr.vmem [resolvable:$true] %s393
          %s395 = sshll.u32 %s391, 4
          %s396 = int_to_ptr.hbm [resolvable:$true] %s395
          %398 = dma.vmem_to_hbm [thread:$0]  %s394, 128, %s396, %s377
        $region32: #{tpu_custom_call.1} parent=23 // pred_fallthru
          _
        // Predicated region
        $region33: #{tpu_custom_call.1} parent=23 // pred_check
          %p399 = pneg %p101
        $region34: #{tpu_custom_call.1} parent=23 // pred_check_branch
          %401 = sbr.rel (%p399) target = $region36
        $region35: #{tpu_custom_call.1} parent=23 // pred_region
          %403 = vsyncadd %s382, 0
          %s404 = scalar_lea.hbm %s4, %s36
          %s406 = sshll.u32 %s384, 4
          %s407 = int_to_ptr.vmem [resolvable:$true] %s406
          %s408 = sshll.u32 %s404, 4
          %s409 = int_to_ptr.hbm [resolvable:$true] %s408
          %411 = dma.vmem_to_hbm [thread:$0]  %s407, 16, %s409, %s382
        $region36: #{tpu_custom_call.1} parent=23 // pred_fallthru
          _
      $region24: #{tpu_custom_call.1} parent=5 // pred_fallthru
        _
      %p412 = scmp.le.s32.totalorder 2, %s31
      // Predicated region
      $region37: #{tpu_custom_call.1} parent=5 // pred_check
        %p413 = pneg %p412
      $region38: #{tpu_custom_call.1} parent=5 // pred_check_branch
        %415 = sbr.rel (%p413) target = $region40
      $region39: #{tpu_custom_call.1} parent=5 // pred_region
        %s416 = ssub.s32 %s31, 2
        // Predicated region
        $region41: #{tpu_custom_call.1} parent=39 // pred_check
          %p417 = pneg %p81
        $region42: #{tpu_custom_call.1} parent=39 // pred_check_branch
          %419 = sbr.rel (%p417) target = $region44
        $region43: #{tpu_custom_call.1} parent=39 // pred_region
          %s420 = sand.u32 %s66, 1
          %s421 = scalar_lea.sflag [#allocation7], %s420
          %s422 = sand.u32 %s66, 1
          %s423 = smul.addr %s422, 8
          %s424 = scalar_lea.vmem [#allocation8], %s423
          %426 = dma.done %s421, 128
        $region44: #{tpu_custom_call.1} parent=39 // pred_fallthru
          _
        // Predicated region
        $region45: #{tpu_custom_call.1} parent=39 // pred_check
          %p427 = pneg %p107
        $region46: #{tpu_custom_call.1} parent=39 // pred_check_branch
          %429 = sbr.rel (%p427) target = $region48
        $region47: #{tpu_custom_call.1} parent=39 // pred_region
          %s430 = sand.u32 %s92, 1
          %s431 = scalar_lea.sflag [#allocation10], %s430
          %s432 = sand.u32 %s92, 1
          %s433 = scalar_lea.vmem [#allocation9], %s432
          %435 = dma.done %s431, 16
        $region48: #{tpu_custom_call.1} parent=39 // pred_fallthru
          _
      $region40: #{tpu_custom_call.1} parent=5 // pred_fallthru
        _
    $region6: #{tpu_custom_call.1} parent=1 // loop_footer
      %s35 = sadd.s32 1, %s31
    $region7: #{tpu_custom_call.1} parent=1 // loop_footer_branch
      %30 = sbr.rel target = $region3
    $region8: #{tpu_custom_call.1} parent=1 // loop_exit
      _
    %436 = vsyncpa [#allocation6], 1
    %s437 = scalar_lea.sflag [#allocation6], 1
    %438 = vsyncpa %s437, 1
    %439 = vsyncpa [#allocation7], 1
    %s440 = scalar_lea.sflag [#allocation7], 1
    %441 = vsyncpa %s440, 1
    %442 = vsyncpa [#allocation10], 1
    %s443 = scalar_lea.sflag [#allocation10], 1
    %444 = vsyncpa %s443, 1

</llo_original>
